<compile_context>
chip_gen: v6e
topology: v6e:2x2x1
jax: 0.10.0
libtpu: 0.0.40
codegen_flags: <defaults>
</compile_context>

<pallas_src>
import jax
import jax.numpy as jnp
from jax.experimental import pallas as pl
from jax.experimental.pallas import tpu as pltpu


def _emission_kernel(xi_ref, mw_ref, tbl_ref, pt_ref, comp_ref, imp_ref, ll_ref):
    # xi_ref  : (1, TN)   int32   category index per node (lane-dense)
    # mw_ref  : (C, TN)   float32 raw mixture weights, transposed
    # tbl_ref : (2C, K)   float32 rows 0..C-1 = log(p_renorm), rows C..2C-1 = p_renorm (resident)
    # pt_ref  : (K, C)    float32 clamped softmax probs, transposed (resident)
    # comp_ref: (C, TN)   per-component log-likelihood
    # imp_ref : (K, TN)   imputed probs
    # ll_ref  : (1, TN)   mixture log-likelihood
    C, TN = mw_ref.shape
    C2, K = tbl_ref.shape            # C2 == 2*C
    Kk = pt_ref.shape[0]             # == K

    xi = xi_ref[...]                 # (1, TN) int32
    mw = mw_ref[...]                 # (C, TN) f32

    # ---- gather log_p_renorm and p_renorm per node: one K-step compare/select chain (VPU) ----
    g = jnp.broadcast_to(tbl_ref[:, 0:1], (C2, TN))
    for k in range(1, K):
        sel = jnp.broadcast_to(xi == k, (C2, TN))
        col = jnp.broadcast_to(tbl_ref[:, k:k + 1], (C2, TN))
        g = jnp.where(sel, col, g)
    comp = g[:C]                     # (C, TN) log p_renorm[c, x_n]
    pg = g[C:]                       # (C, TN) p_renorm[c, x_n]

    # ---- mixture log-likelihood without logsumexp (valid since p >= 1e-8 after clamp) ----
    # ll = log(sum_c mw_c * p_ren[c, x]) - log(sum_c mw_c)
    prod = mw * pg                   # (C, TN), single batched VPU multiply
    num = prod[0:1]
    wsum = mw[0:1]
    for c in range(1, C):            # C is tiny & static -> unrolled row adds
        num = num + prod[c:c + 1]
        wsum = wsum + mw[c:c + 1]
    ll_ref[...] = jnp.log(num) - jnp.log(wsum)

    # ---- imputed_probs: imp[k, n] = sum_c p[c, k] * mw[c, n]  (C FMAs on (K, TN)) ----
    imp = jnp.broadcast_to(pt_ref[:, 0:1], (Kk, TN)) * jnp.broadcast_to(mw[0:1], (Kk, TN))
    for c in range(1, C):
        imp = imp + (jnp.broadcast_to(pt_ref[:, c:c + 1], (Kk, TN))
                     * jnp.broadcast_to(mw[c:c + 1], (Kk, TN)))

    comp_ref[...] = comp
    imp_ref[...] = imp


def _round_up(v, m):
    return ((v + m - 1) // m) * m


def gspn_categorical_emission_forward(x, mixture_weights, categorical_probs_raw,
                                      masked_nodes=None, *, block_n=8192):
    """Pallas port of GSPNCategoricalEmission.forward (masked_nodes=None path)."""
    if masked_nodes is not None:
        raise NotImplementedError('Not implemented!')  # matches the PyTorch module

    if x.ndim == 2:                      # (N, K) scores -> categories, as in log_likelihood()
        x = jnp.argmax(x, axis=1)
    x = x.astype(jnp.int32)
    mw = mixture_weights.astype(jnp.float32)
    N = x.shape[0]
    C, K = categorical_probs_raw.shape

    # ---- hoisted parameter preprocessing (tiny (C, K) table, done once in XLA) ----
    raw = categorical_probs_raw.astype(jnp.float32)
    p = jax.nn.softmax(raw - jnp.max(raw, axis=-1, keepdims=True), axis=-1)
    p = jnp.clip(p, 1e-8, 1.0)                                    # exp_normalize_trick
    categorical_probs = p[None]                                   # (1, C, K) module output
    p_ren = p / jnp.sum(p, axis=-1, keepdims=True)                # torch Categorical renorm
    log_p = jnp.log(p_ren)                                        # (C, K)
    tbl = jnp.concatenate([log_p, p_ren], axis=0)                 # (2C, K) gather table
    pt = p.T                                                      # (K, C) for impute

    # ---- lane-dense inputs: nodes on the lane (last) axis, no padding copies ----
    xi = x[None, :]                                               # (1, N)
    mw_t = mw.T                                                   # (C, N)

    # Tile width: as wide as possible, multiple of 128, but keep >=4 grid blocks when N allows
    # (v7x megacore sharding); ragged last block handled by Pallas masking.
    n_aligned = _round_up(max(N, 1), 128)
    target = max(128, _round_up(pl.cdiv(N, 4), 128))
    block = max(128, min(_round_up(block_n, 128), target, n_aligned))
    grid = (pl.cdiv(N, block),)

    cost = pl.CostEstimate(
        flops=int(N) * (4 * C * K + 3 * C + 4),
        transcendentals=2 * int(N),
        bytes_accessed=int(N) * 4 * (2 * C + K + 2),
    )

    comp_t, imp_t, ll2 = pl.pallas_call(
        _emission_kernel,
        out_shape=(
            jax.ShapeDtypeStruct((C, N), jnp.float32),
            jax.ShapeDtypeStruct((K, N), jnp.float32),
            jax.ShapeDtypeStruct((1, N), jnp.float32),
        ),
        grid_spec=pltpu.PrefetchScalarGridSpec(
            num_scalar_prefetch=0,
            grid=grid,
            in_specs=[
                pl.BlockSpec((1, block), lambda i: (0, i)),        # x indices (lane-dense)
                pl.BlockSpec((C, block), lambda i: (0, i)),        # mixture weights^T
                pl.BlockSpec((2 * C, K), lambda i: (0, 0)),        # [log_p ; p_ren] table (resident)
                pl.BlockSpec((K, C), lambda i: (0, 0)),            # p^T (resident)
            ],
            out_specs=[
                pl.BlockSpec((C, block), lambda i: (0, i)),        # components (lane-dense)
                pl.BlockSpec((K, block), lambda i: (0, i)),        # imputed (lane-dense)
                pl.BlockSpec((1, block), lambda i: (0, i)),        # log-likelihood
            ],
        ),
        compiler_params=pltpu.CompilerParams(
            dimension_semantics=("parallel",),
            vmem_limit_bytes=32 * 1024 * 1024,
        ),
        cost_estimate=cost,
    )(xi, mw_t, tbl, pt)

    # NOTE: downstream consumers that can take the lane-dense (C, N)/(K, N) layout directly
    # should do so; the transposes below are only to match the PyTorch module's (N, C)/(N, K).
    comp_lp = comp_t.T                     # (N, C)
    imputed = imp_t.T                      # (N, K)
    per_vertex_ll = ll2[0]                 # (N,)
    return categorical_probs, per_vertex_ll, comp_lp, imputed


def _reference(x_idx, mw, raw_probs):
    """Pure-JAX reference mirroring the PyTorch semantics."""
    p = jax.nn.softmax(raw_probs - jnp.max(raw_probs, axis=-1, keepdims=True), axis=-1)
    p = jnp.clip(p, 1e-8, 1.0)                                         # (C, K)
    log_p = jnp.log(p) - jnp.log(jnp.sum(p, axis=-1, keepdims=True))
    comp_lp = log_p.T[x_idx]                                           # (N, C)
    log_mix = jnp.log(mw) - jnp.log(jnp.sum(mw, axis=-1, keepdims=True))
    ll = jax.scipy.special.logsumexp(comp_lp + log_mix, axis=-1)       # (N,)
    imputed = mw @ p                                                   # (N, K)
    return comp_lp, ll, imputed


if __name__ == "__main__":
    # Shapes consistent with the module: dim_observable = num_categories = 8,
    # num_mixtures = 4, num_hidden_neurons = 32 (stored but unused in forward).
    # N chosen so the auto block-width cap yields a 4-step "parallel" grid.
    N, K, C, H = 1024, 8, 4, 32

    key = jax.random.PRNGKey(0)
    k_x, k_w, k_p = jax.random.split(key, 3)
    x = jax.random.randint(k_x, (N,), 0, K)
    mixture_weights = jax.nn.softmax(
        jax.random.normal(k_w, (N, C), dtype=jnp.float32), axis=-1)
    # nn.init.uniform_(torch.empty(num_mixtures, dim_observable)) -> U(0, 1)
    categorical_probs_raw = jax.random.uniform(k_p, (C, K), dtype=jnp.float32)

    out = gspn_categorical_emission_forward(x, mixture_weights, categorical_probs_raw)
    out = jax.block_until_ready(out)
    categorical_probs, ll, comp, imputed = out

    assert categorical_probs.shape == (1, C, K)
    assert ll.shape == (N,)
    assert comp.shape == (N, C)
    assert imputed.shape == (N, K)

    comp_ref, ll_ref, imp_ref = _reference(x, mixture_weights, categorical_probs_raw)
    assert jnp.allclose(comp, comp_ref, atol=1e-5, rtol=1e-5)
    assert jnp.allclose(ll, ll_ref, atol=1e-5, rtol=1e-5)
    assert jnp.allclose(imputed, imp_ref, atol=1e-5, rtol=1e-5)

    print("KERNEL_OK")
</pallas_src>

<mosaic_0001>
module attributes {stable_mosaic.version = 11 : i64} {
  func.func @_emission_kernel(%arg0: i32, %arg1: memref<1x256xi32, #tpu.memory_space<vmem>>, %arg2: memref<4x256xf32, #tpu.memory_space<vmem>>, %arg3: memref<8x8xf32, #tpu.memory_space<vmem>>, %arg4: memref<8x4xf32, #tpu.memory_space<vmem>>, %arg5: memref<4x256xf32, #tpu.memory_space<vmem>>, %arg6: memref<8x256xf32, #tpu.memory_space<vmem>>, %arg7: memref<1x256xf32, #tpu.memory_space<vmem>>) attributes {dimension_semantics = [#tpu.dimension_semantics<parallel>], iteration_bounds = array<i64: 4>, scalar_prefetch = 0 : i64, scratch_operands = 0 : i64, tpu.core_type = #tpu.core_type<tc>, window_params = [{transform_indices = @transform_0, window_bounds = array<i64: 1, 256>}, {transform_indices = @transform_1, window_bounds = array<i64: 4, 256>}, {pipeline_mode = #tpu.pipeline_mode<synchronous>, transform_indices = @transform_2, window_bounds = array<i64: 8, 8>}, {pipeline_mode = #tpu.pipeline_mode<synchronous>, transform_indices = @transform_3, window_bounds = array<i64: 8, 4>}, {transform_indices = @transform_4, window_bounds = array<i64: 4, 256>}, {transform_indices = @transform_5, window_bounds = array<i64: 8, 256>}, {transform_indices = @transform_6, window_bounds = array<i64: 1, 256>}]} {
    %c0 = arith.constant 0 : index
    %c0_0 = arith.constant 0 : index
    %0 = vector.load %arg1[%c0, %c0_0] : memref<1x256xi32, #tpu.memory_space<vmem>>, vector<1x256xi32>
    %c0_1 = arith.constant 0 : index
    %c0_2 = arith.constant 0 : index
    %1 = vector.load %arg2[%c0_1, %c0_2] : memref<4x256xf32, #tpu.memory_space<vmem>>, vector<4x256xf32>
    %c0_3 = arith.constant 0 : index
    %c0_4 = arith.constant 0 : index
    %2 = vector.load %arg3[%c0_3, %c0_4] : memref<8x8xf32, #tpu.memory_space<vmem>>, vector<8x1xf32>
    %3 = vector.shape_cast %2 : vector<8x1xf32> to vector<8x1xf32>
    %4 = vector.broadcast %3 : vector<8x1xf32> to vector<8x256xf32>
    %c1_i32 = arith.constant 1 : i32
    %5 = vector.broadcast %c1_i32 : i32 to vector<1x256xi32>
    %6 = arith.cmpi eq, %0, %5 : vector<1x256xi32>
    %7 = vector.shape_cast %6 : vector<1x256xi1> to vector<1x256xi1>
    %8 = vector.broadcast %7 : vector<1x256xi1> to vector<8x256xi1>
    %c0_5 = arith.constant 0 : index
    %c1 = arith.constant 1 : index
    %9 = vector.load %arg3[%c0_5, %c1] : memref<8x8xf32, #tpu.memory_space<vmem>>, vector<8x1xf32>
    %10 = vector.shape_cast %9 : vector<8x1xf32> to vector<8x1xf32>
    %11 = vector.broadcast %10 : vector<8x1xf32> to vector<8x256xf32>
    %12 = arith.select %8, %11, %4 : vector<8x256xi1>, vector<8x256xf32>
    %c2_i32 = arith.constant 2 : i32
    %13 = vector.broadcast %c2_i32 : i32 to vector<1x256xi32>
    %14 = arith.cmpi eq, %0, %13 : vector<1x256xi32>
    %15 = vector.shape_cast %14 : vector<1x256xi1> to vector<1x256xi1>
    %16 = vector.broadcast %15 : vector<1x256xi1> to vector<8x256xi1>
    %c0_6 = arith.constant 0 : index
    %c2 = arith.constant 2 : index
    %17 = vector.load %arg3[%c0_6, %c2] : memref<8x8xf32, #tpu.memory_space<vmem>>, vector<8x1xf32>
    %18 = vector.shape_cast %17 : vector<8x1xf32> to vector<8x1xf32>
    %19 = vector.broadcast %18 : vector<8x1xf32> to vector<8x256xf32>
    %20 = arith.select %16, %19, %12 : vector<8x256xi1>, vector<8x256xf32>
    %c3_i32 = arith.constant 3 : i32
    %21 = vector.broadcast %c3_i32 : i32 to vector<1x256xi32>
    %22 = arith.cmpi eq, %0, %21 : vector<1x256xi32>
    %23 = vector.shape_cast %22 : vector<1x256xi1> to vector<1x256xi1>
    %24 = vector.broadcast %23 : vector<1x256xi1> to vector<8x256xi1>
    %c0_7 = arith.constant 0 : index
    %c3 = arith.constant 3 : index
    %25 = vector.load %arg3[%c0_7, %c3] : memref<8x8xf32, #tpu.memory_space<vmem>>, vector<8x1xf32>
    %26 = vector.shape_cast %25 : vector<8x1xf32> to vector<8x1xf32>
    %27 = vector.broadcast %26 : vector<8x1xf32> to vector<8x256xf32>
    %28 = arith.select %24, %27, %20 : vector<8x256xi1>, vector<8x256xf32>
    %c4_i32 = arith.constant 4 : i32
    %29 = vector.broadcast %c4_i32 : i32 to vector<1x256xi32>
    %30 = arith.cmpi eq, %0, %29 : vector<1x256xi32>
    %31 = vector.shape_cast %30 : vector<1x256xi1> to vector<1x256xi1>
    %32 = vector.broadcast %31 : vector<1x256xi1> to vector<8x256xi1>
    %c0_8 = arith.constant 0 : index
    %c4 = arith.constant 4 : index
    %33 = vector.load %arg3[%c0_8, %c4] : memref<8x8xf32, #tpu.memory_space<vmem>>, vector<8x1xf32>
    %34 = vector.shape_cast %33 : vector<8x1xf32> to vector<8x1xf32>
    %35 = vector.broadcast %34 : vector<8x1xf32> to vector<8x256xf32>
    %36 = arith.select %32, %35, %28 : vector<8x256xi1>, vector<8x256xf32>
    %c5_i32 = arith.constant 5 : i32
    %37 = vector.broadcast %c5_i32 : i32 to vector<1x256xi32>
    %38 = arith.cmpi eq, %0, %37 : vector<1x256xi32>
    %39 = vector.shape_cast %38 : vector<1x256xi1> to vector<1x256xi1>
    %40 = vector.broadcast %39 : vector<1x256xi1> to vector<8x256xi1>
    %c0_9 = arith.constant 0 : index
    %c5 = arith.constant 5 : index
    %41 = vector.load %arg3[%c0_9, %c5] : memref<8x8xf32, #tpu.memory_space<vmem>>, vector<8x1xf32>
    %42 = vector.shape_cast %41 : vector<8x1xf32> to vector<8x1xf32>
    %43 = vector.broadcast %42 : vector<8x1xf32> to vector<8x256xf32>
    %44 = arith.select %40, %43, %36 : vector<8x256xi1>, vector<8x256xf32>
    %c6_i32 = arith.constant 6 : i32
    %45 = vector.broadcast %c6_i32 : i32 to vector<1x256xi32>
    %46 = arith.cmpi eq, %0, %45 : vector<1x256xi32>
    %47 = vector.shape_cast %46 : vector<1x256xi1> to vector<1x256xi1>
    %48 = vector.broadcast %47 : vector<1x256xi1> to vector<8x256xi1>
    %c0_10 = arith.constant 0 : index
    %c6 = arith.constant 6 : index
    %49 = vector.load %arg3[%c0_10, %c6] : memref<8x8xf32, #tpu.memory_space<vmem>>, vector<8x1xf32>
    %50 = vector.shape_cast %49 : vector<8x1xf32> to vector<8x1xf32>
    %51 = vector.broadcast %50 : vector<8x1xf32> to vector<8x256xf32>
    %52 = arith.select %48, %51, %44 : vector<8x256xi1>, vector<8x256xf32>
    %c7_i32 = arith.constant 7 : i32
    %53 = vector.broadcast %c7_i32 : i32 to vector<1x256xi32>
    %54 = arith.cmpi eq, %0, %53 : vector<1x256xi32>
    %55 = vector.shape_cast %54 : vector<1x256xi1> to vector<1x256xi1>
    %56 = vector.broadcast %55 : vector<1x256xi1> to vector<8x256xi1>
    %c0_11 = arith.constant 0 : index
    %c7 = arith.constant 7 : index
    %57 = vector.load %arg3[%c0_11, %c7] : memref<8x8xf32, #tpu.memory_space<vmem>>, vector<8x1xf32>
    %58 = vector.shape_cast %57 : vector<8x1xf32> to vector<8x1xf32>
    %59 = vector.broadcast %58 : vector<8x1xf32> to vector<8x256xf32>
    %60 = arith.select %56, %59, %52 : vector<8x256xi1>, vector<8x256xf32>
    %61 = vector.extract_strided_slice %60 {offsets = [0, 0], sizes = [4, 256], strides = [1, 1]} : vector<8x256xf32> to vector<4x256xf32>
    %62 = vector.extract_strided_slice %60 {offsets = [4, 0], sizes = [4, 256], strides = [1, 1]} : vector<8x256xf32> to vector<4x256xf32>
    %63 = arith.mulf %1, %62 : vector<4x256xf32>
    %64 = vector.extract_strided_slice %63 {offsets = [0, 0], sizes = [1, 256], strides = [1, 1]} : vector<4x256xf32> to vector<1x256xf32>
    %65 = vector.extract_strided_slice %1 {offsets = [0, 0], sizes = [1, 256], strides = [1, 1]} : vector<4x256xf32> to vector<1x256xf32>
    %66 = vector.extract_strided_slice %63 {offsets = [1, 0], sizes = [1, 256], strides = [1, 1]} : vector<4x256xf32> to vector<1x256xf32>
    %67 = arith.addf %64, %66 : vector<1x256xf32>
    %68 = vector.extract_strided_slice %1 {offsets = [1, 0], sizes = [1, 256], strides = [1, 1]} : vector<4x256xf32> to vector<1x256xf32>
    %69 = arith.addf %65, %68 : vector<1x256xf32>
    %70 = vector.extract_strided_slice %63 {offsets = [2, 0], sizes = [1, 256], strides = [1, 1]} : vector<4x256xf32> to vector<1x256xf32>
    %71 = arith.addf %67, %70 : vector<1x256xf32>
    %72 = vector.extract_strided_slice %1 {offsets = [2, 0], sizes = [1, 256], strides = [1, 1]} : vector<4x256xf32> to vector<1x256xf32>
    %73 = arith.addf %69, %72 : vector<1x256xf32>
    %74 = vector.extract_strided_slice %63 {offsets = [3, 0], sizes = [1, 256], strides = [1, 1]} : vector<4x256xf32> to vector<1x256xf32>
    %75 = arith.addf %71, %74 : vector<1x256xf32>
    %76 = vector.extract_strided_slice %1 {offsets = [3, 0], sizes = [1, 256], strides = [1, 1]} : vector<4x256xf32> to vector<1x256xf32>
    %77 = arith.addf %73, %76 : vector<1x256xf32>
    %78 = math.log %75 : vector<1x256xf32>
    %79 = math.log %77 : vector<1x256xf32>
    %80 = arith.subf %78, %79 : vector<1x256xf32>
    %c0_12 = arith.constant 0 : index
    %c0_13 = arith.constant 0 : index
    %81 = vector.load %arg7[%c0_12, %c0_13] : memref<1x256xf32, #tpu.memory_space<vmem>>, vector<1x256xf32>
    tpu.vector_store %arg7[%c0_12, %c0_13], %80 {strides = array<i32>} : memref<1x256xf32, #tpu.memory_space<vmem>>, vector<1x256xf32>,
    %c0_14 = arith.constant 0 : index
    %c0_15 = arith.constant 0 : index
    %82 = vector.load %arg4[%c0_14, %c0_15] : memref<8x4xf32, #tpu.memory_space<vmem>>, vector<8x1xf32>
    %83 = vector.shape_cast %82 : vector<8x1xf32> to vector<8x1xf32>
    %84 = vector.broadcast %83 : vector<8x1xf32> to vector<8x256xf32>
    %85 = vector.extract_strided_slice %1 {offsets = [0, 0], sizes = [1, 256], strides = [1, 1]} : vector<4x256xf32> to vector<1x256xf32>
    %86 = vector.shape_cast %85 : vector<1x256xf32> to vector<1x256xf32>
    %87 = vector.broadcast %86 : vector<1x256xf32> to vector<8x256xf32>
    %88 = arith.mulf %84, %87 : vector<8x256xf32>
    %c0_16 = arith.constant 0 : index
    %c1_17 = arith.constant 1 : index
    %89 = vector.load %arg4[%c0_16, %c1_17] : memref<8x4xf32, #tpu.memory_space<vmem>>, vector<8x1xf32>
    %90 = vector.shape_cast %89 : vector<8x1xf32> to vector<8x1xf32>
    %91 = vector.broadcast %90 : vector<8x1xf32> to vector<8x256xf32>
    %92 = vector.extract_strided_slice %1 {offsets = [1, 0], sizes = [1, 256], strides = [1, 1]} : vector<4x256xf32> to vector<1x256xf32>
    %93 = vector.shape_cast %92 : vector<1x256xf32> to vector<1x256xf32>
    %94 = vector.broadcast %93 : vector<1x256xf32> to vector<8x256xf32>
    %95 = arith.mulf %91, %94 : vector<8x256xf32>
    %96 = arith.addf %88, %95 : vector<8x256xf32>
    %c0_18 = arith.constant 0 : index
    %c2_19 = arith.constant 2 : index
    %97 = vector.load %arg4[%c0_18, %c2_19] : memref<8x4xf32, #tpu.memory_space<vmem>>, vector<8x1xf32>
    %98 = vector.shape_cast %97 : vector<8x1xf32> to vector<8x1xf32>
    %99 = vector.broadcast %98 : vector<8x1xf32> to vector<8x256xf32>
    %100 = vector.extract_strided_slice %1 {offsets = [2, 0], sizes = [1, 256], strides = [1, 1]} : vector<4x256xf32> to vector<1x256xf32>
    %101 = vector.shape_cast %100 : vector<1x256xf32> to vector<1x256xf32>
    %102 = vector.broadcast %101 : vector<1x256xf32> to vector<8x256xf32>
    %103 = arith.mulf %99, %102 : vector<8x256xf32>
    %104 = arith.addf %96, %103 : vector<8x256xf32>
    %c0_20 = arith.constant 0 : index
    %c3_21 = arith.constant 3 : index
    %105 = vector.load %arg4[%c0_20, %c3_21] : memref<8x4xf32, #tpu.memory_space<vmem>>, vector<8x1xf32>
    %106 = vector.shape_cast %105 : vector<8x1xf32> to vector<8x1xf32>
    %107 = vector.broadcast %106 : vector<8x1xf32> to vector<8x256xf32>
    %108 = vector.extract_strided_slice %1 {offsets = [3, 0], sizes = [1, 256], strides = [1, 1]} : vector<4x256xf32> to vector<1x256xf32>
    %109 = vector.shape_cast %108 : vector<1x256xf32> to vector<1x256xf32>
    %110 = vector.broadcast %109 : vector<1x256xf32> to vector<8x256xf32>
    %111 = arith.mulf %107, %110 : vector<8x256xf32>
    %112 = arith.addf %104, %111 : vector<8x256xf32>
    %c0_22 = arith.constant 0 : index
    %c0_23 = arith.constant 0 : index
    %113 = vector.load %arg5[%c0_22, %c0_23] : memref<4x256xf32, #tpu.memory_space<vmem>>, vector<4x256xf32>
    tpu.vector_store %arg5[%c0_22, %c0_23], %61 {strides = array<i32>} : memref<4x256xf32, #tpu.memory_space<vmem>>, vector<4x256xf32>,
    %c0_24 = arith.constant 0 : index
    %c0_25 = arith.constant 0 : index
    %114 = vector.load %arg6[%c0_24, %c0_25] : memref<8x256xf32, #tpu.memory_space<vmem>>, vector<8x256xf32>
    tpu.vector_store %arg6[%c0_24, %c0_25], %112 {strides = array<i32>} : memref<8x256xf32, #tpu.memory_space<vmem>>, vector<8x256xf32>,
    return
  }
  func.func @transform_0(%arg0: i32) -> (i32, i32) {
    %c0_i32 = arith.constant 0 : i32
    %c0_i32_0 = arith.constant 0 : i32
    return %c0_i32, %arg0 : i32, i32
  }
  func.func @transform_1(%arg0: i32) -> (i32, i32) {
    %c0_i32 = arith.constant 0 : i32
    %c0_i32_0 = arith.constant 0 : i32
    return %c0_i32, %arg0 : i32, i32
  }
  func.func @transform_2(%arg0: i32) -> (i32, i32) {
    %c0_i32 = arith.constant 0 : i32
    %c0_i32_0 = arith.constant 0 : i32
    %c0_i32_1 = arith.constant 0 : i32
    return %c0_i32, %c0_i32_0 : i32, i32
  }
  func.func @transform_3(%arg0: i32) -> (i32, i32) {
    %c0_i32 = arith.constant 0 : i32
    %c0_i32_0 = arith.constant 0 : i32
    %c0_i32_1 = arith.constant 0 : i32
    return %c0_i32, %c0_i32_0 : i32, i32
  }
  func.func @transform_4(%arg0: i32) -> (i32, i32) {
    %c0_i32 = arith.constant 0 : i32
    %c0_i32_0 = arith.constant 0 : i32
    return %c0_i32, %arg0 : i32, i32
  }
  func.func @transform_5(%arg0: i32) -> (i32, i32) {
    %c0_i32 = arith.constant 0 : i32
    %c0_i32_0 = arith.constant 0 : i32
    return %c0_i32, %arg0 : i32, i32
  }
  func.func @transform_6(%arg0: i32) -> (i32, i32) {
    %c0_i32 = arith.constant 0 : i32
    %c0_i32_0 = arith.constant 0 : i32
    return %c0_i32, %arg0 : i32, i32
  }
}

</mosaic_0001>

<llo_original>
// kernel: tpu_custom_call.1
$region0: #{tpu_custom_call.1}
  #allocation0 [shape = 'u32[]', space=smem, size = 0x4, offset = 0x4, fixed_abs, tag = 'smem constant byte address 0x4 - core index']
  #allocation1 [shape = 'u32[144,128]{1,0:T(1,128)}', space=vmem, size = 0x12000, scoped, tag = 'internal scratch']
  %s0 = inlined_call_operand.vmem [shape: s32[1,1024], index: 0, kind: input, shape index: {}]
  %s1 = inlined_call_operand.hbm [shape: f32[4,1024], index: 1, kind: input, shape index: {}]
  %s2 = inlined_call_operand.hbm [shape: f32[8,8], index: 2, kind: input, shape index: {}]
  %s3 = inlined_call_operand.vmem [shape: f32[8,4], index: 3, kind: input, shape index: {}]
  %s4 = inlined_call_operand.hbm [shape: f32[4,1024], index: 4, kind: output, shape index: {0}]
  %s5 = inlined_call_operand.hbm [shape: f32[8,1024], index: 5, kind: output, shape index: {1}]
  %s6 = inlined_call_operand.hbm [shape: f32[1,1024], index: 6, kind: output, shape index: {2}]
  %7 = xla_tuple %s4, %s5, %s6
  %s8 = sld [smem:[#allocation0]]
  $region73: #{tpu_custom_call.1} parent=0
    _
  %s10 = ssub.s32 1, %s8
  %s11 = scalar_select 0, %s10, %s8
  $region1: #{tpu_custom_call.1} parent=0
    #allocation2 [shape = 'u8[8192]{0}', space=vmem, size = 0x2000, scoped, tag = 'input window, operand 1']
    #allocation3 [shape = 's32[2]{0}', space=sflag, size = 0x8, scoped, tag = 'scoped memory for tpu_custom_call.1']
    #allocation4 [shape = 's32[2]{0}', space=sflag, size = 0x8, scoped, tag = 'scoped memory for tpu_custom_call.1']
    #allocation5 [shape = 'u8[4096]{0}', space=vmem, size = 0x1000, scoped, tag = 'input window, operand 2, single buffered']
    #allocation6 [shape = 's32[1]{0}', space=sflag, size = 0x4, scoped, tag = 'scoped memory for tpu_custom_call.1']
    #allocation7 [shape = 'u8[8192]{0}', space=vmem, size = 0x2000, scoped, tag = 'output window, operand 0']
    #allocation8 [shape = 'u8[16384]{0}', space=vmem, size = 0x4000, scoped, tag = 'output window, operand 1']
    #allocation9 [shape = 's32[2]{0}', space=sflag, size = 0x8, scoped, tag = 'scoped memory for tpu_custom_call.1']
    #allocation10 [shape = 'u8[2048]{0}', space=vmem, size = 0x800, scoped, tag = 'output window, operand 2']
    %12 = vsyncpa [#allocation3], 0
    %s13 = scalar_lea.sflag [#allocation3], 1
    %14 = vsyncpa %s13, 0
    %15 = vsyncpa [#allocation6], 0
    %16 = vsyncpa [#allocation4], 0
    %s17 = scalar_lea.sflag [#allocation4], 1
    %18 = vsyncpa %s17, 0
    %19 = vsyncpa [#allocation9], 0
    %s20 = scalar_lea.sflag [#allocation9], 1
    %21 = vsyncpa %s20, 0
    loop: start=0, step=1, limit=6
    $region2: #{tpu_custom_call.1} parent=1 // loop_pre_header
      _
    $region3: #{tpu_custom_call.1} parent=1 // loop_header
      %s23 = sphi 0, %s27
      %p24 = scmp.ge.s32.totalorder %s23, 6
      %s33 = sphi 0, %s35
      %s36 = sphi 0, %s33
      %s37 = sphi 0, %s36
      %s53 = sphi 0, %s37
      %s59 = sphi 0, %s61
      %s62 = sphi 0, %s59
      %s63 = sphi 0, %s62
      %s79 = sphi 0, %s63
      %s83 = sphi 0, %s83
      %s85 = sphi 0, %s83
      %s86 = sphi 0, %s85
      %s100 = sphi 0, %s86
      %s104 = sphi 0, %s104
      %s106 = sphi 0, %s104
      %s107 = sphi 0, %s106
      %s121 = sphi 0, %s107
      %s127 = sphi 0, %s129
      %s130 = sphi 0, %s127
      %s131 = sphi 0, %s130
      %s147 = sphi 0, %s131
      %s153 = sphi 0, %s155
      %s156 = sphi 0, %s153
      %s157 = sphi 0, %s156
      %s173 = sphi 0, %s157
      %s179 = sphi 0, %s181
      %s182 = sphi 0, %s179
      %s183 = sphi 0, %s182
      %s199 = sphi 0, %s183
    $region4: #{tpu_custom_call.1} parent=1 // loop_header_branch
      %26 = sbr.rel (%p24) target = $region8
    $region5: #{tpu_custom_call.1} parent=1 // loop_body
      %s28 = ssub.s32 %s23, 1
      %s29 = ssub.s32 %s23, 2
      %s30 = sadd.s32 %s23, 1
      %s31 = ssub.s32 %s23, %s30
      %p32 = scmp.eq.s32.totalorder %s31, 0
      %s34 = sadd.s32 %s33, 1
      %s35 = scalar_select %p32, %s33, %s34
      %p38 = pneg %p32
      %p39 = scmp.eq.s32.totalorder %s23, 3
      %p40 = por %p38, %p39
      %p41 = scmp.ne.s32.totalorder %s33, %s36
      %p42 = scmp.eq.s32.totalorder %s23, 0
      %p43 = por %p41, %p42
      %p44 = scmp.ne.s32.totalorder %s33, %s36
      %p45 = scmp.eq.s32.totalorder %s28, 3
      %p46 = por %p44, %p45
      %p47 = scmp.ne.s32.totalorder %s36, %s37
      %p48 = scmp.eq.s32.totalorder %s28, 0
      %p49 = por %p47, %p48
      %p50 = scmp.ne.s32.totalorder %s36, %s37
      %p51 = scmp.eq.s32.totalorder %s29, 3
      %p52 = por %p50, %p51
      %p54 = scmp.ne.s32.totalorder %s37, %s53
      %p55 = scmp.eq.s32.totalorder %s29, 0
      %p56 = por %p54, %p55
      %s57 = ssub.s32 %s23, %s30
      %p58 = scmp.eq.s32.totalorder %s57, 0
      %s60 = sadd.s32 %s59, 1
      %s61 = scalar_select %p58, %s59, %s60
      %p64 = pneg %p58
      %p65 = scmp.eq.s32.totalorder %s23, 3
      %p66 = por %p64, %p65
      %p67 = scmp.ne.s32.totalorder %s59, %s62
      %p68 = scmp.eq.s32.totalorder %s23, 0
      %p69 = por %p67, %p68
      %p70 = scmp.ne.s32.totalorder %s59, %s62
      %p71 = scmp.eq.s32.totalorder %s28, 3
      %p72 = por %p70, %p71
      %p73 = scmp.ne.s32.totalorder %s62, %s63
      %p74 = scmp.eq.s32.totalorder %s28, 0
      %p75 = por %p73, %p74
      %p76 = scmp.ne.s32.totalorder %s62, %s63
      %p77 = scmp.eq.s32.totalorder %s29, 3
      %p78 = por %p76, %p77
      %p80 = scmp.ne.s32.totalorder %s63, %s79
      %p81 = scmp.eq.s32.totalorder %s29, 0
      %p82 = por %p80, %p81
      %s84 = sadd.s32 %s83, 1
      %p87 = scmp.eq.s32.totalorder %s23, 3
      %p88 = scmp.ne.s32.totalorder %s83, %s85
      %p89 = scmp.eq.s32.totalorder %s23, 0
      %p90 = por %p88, %p89
      %p91 = scmp.ne.s32.totalorder %s83, %s85
      %p92 = scmp.eq.s32.totalorder %s28, 3
      %p93 = por %p91, %p92
      %p94 = scmp.ne.s32.totalorder %s85, %s86
      %p95 = scmp.eq.s32.totalorder %s28, 0
      %p96 = por %p94, %p95
      %p97 = scmp.ne.s32.totalorder %s85, %s86
      %p98 = scmp.eq.s32.totalorder %s29, 3
      %p99 = por %p97, %p98
      %p101 = scmp.ne.s32.totalorder %s86, %s100
      %p102 = scmp.eq.s32.totalorder %s29, 0
      %p103 = por %p101, %p102
      %s105 = sadd.s32 %s104, 1
      %p108 = scmp.eq.s32.totalorder %s23, 3
      %p109 = scmp.ne.s32.totalorder %s104, %s106
      %p110 = scmp.eq.s32.totalorder %s23, 0
      %p111 = por %p109, %p110
      %p112 = scmp.ne.s32.totalorder %s104, %s106
      %p113 = scmp.eq.s32.totalorder %s28, 3
      %p114 = por %p112, %p113
      %p115 = scmp.ne.s32.totalorder %s106, %s107
      %p116 = scmp.eq.s32.totalorder %s28, 0
      %p117 = por %p115, %p116
      %p118 = scmp.ne.s32.totalorder %s106, %s107
      %p119 = scmp.eq.s32.totalorder %s29, 3
      %p120 = por %p118, %p119
      %p122 = scmp.ne.s32.totalorder %s107, %s121
      %p123 = scmp.eq.s32.totalorder %s29, 0
      %p124 = por %p122, %p123
      %s125 = ssub.s32 %s23, %s30
      %p126 = scmp.eq.s32.totalorder %s125, 0
      %s128 = sadd.s32 %s127, 1
      %s129 = scalar_select %p126, %s127, %s128
      %p132 = pneg %p126
      %p133 = scmp.eq.s32.totalorder %s23, 3
      %p134 = por %p132, %p133
      %p135 = scmp.ne.s32.totalorder %s127, %s130
      %p136 = scmp.eq.s32.totalorder %s23, 0
      %p137 = por %p135, %p136
      %p138 = scmp.ne.s32.totalorder %s127, %s130
      %p139 = scmp.eq.s32.totalorder %s28, 3
      %p140 = por %p138, %p139
      %p141 = scmp.ne.s32.totalorder %s130, %s131
      %p142 = scmp.eq.s32.totalorder %s28, 0
      %p143 = por %p141, %p142
      %p144 = scmp.ne.s32.totalorder %s130, %s131
      %p145 = scmp.eq.s32.totalorder %s29, 3
      %p146 = por %p144, %p145
      %p148 = scmp.ne.s32.totalorder %s131, %s147
      %p149 = scmp.eq.s32.totalorder %s29, 0
      %p150 = por %p148, %p149
      %s151 = ssub.s32 %s23, %s30
      %p152 = scmp.eq.s32.totalorder %s151, 0
      %s154 = sadd.s32 %s153, 1
      %s155 = scalar_select %p152, %s153, %s154
      %p158 = pneg %p152
      %p159 = scmp.eq.s32.totalorder %s23, 3
      %p160 = por %p158, %p159
      %p161 = scmp.ne.s32.totalorder %s153, %s156
      %p162 = scmp.eq.s32.totalorder %s23, 0
      %p163 = por %p161, %p162
      %p164 = scmp.ne.s32.totalorder %s153, %s156
      %p165 = scmp.eq.s32.totalorder %s28, 3
      %p166 = por %p164, %p165
      %p167 = scmp.ne.s32.totalorder %s156, %s157
      %p168 = scmp.eq.s32.totalorder %s28, 0
      %p169 = por %p167, %p168
      %p170 = scmp.ne.s32.totalorder %s156, %s157
      %p171 = scmp.eq.s32.totalorder %s29, 3
      %p172 = por %p170, %p171
      %p174 = scmp.ne.s32.totalorder %s157, %s173
      %p175 = scmp.eq.s32.totalorder %s29, 0
      %p176 = por %p174, %p175
      %s177 = ssub.s32 %s23, %s30
      %p178 = scmp.eq.s32.totalorder %s177, 0
      %s180 = sadd.s32 %s179, 1
      %s181 = scalar_select %p178, %s179, %s180
      %p184 = pneg %p178
      %p185 = scmp.eq.s32.totalorder %s23, 3
      %p186 = por %p184, %p185
      %p187 = scmp.ne.s32.totalorder %s179, %s182
      %p188 = scmp.eq.s32.totalorder %s23, 0
      %p189 = por %p187, %p188
      %p190 = scmp.ne.s32.totalorder %s179, %s182
      %p191 = scmp.eq.s32.totalorder %s28, 3
      %p192 = por %p190, %p191
      %p193 = scmp.ne.s32.totalorder %s182, %s183
      %p194 = scmp.eq.s32.totalorder %s28, 0
      %p195 = por %p193, %p194
      %p196 = scmp.ne.s32.totalorder %s182, %s183
      %p197 = scmp.eq.s32.totalorder %s29, 3
      %p198 = por %p196, %p197
      %p200 = scmp.ne.s32.totalorder %s183, %s199
      %p201 = scmp.eq.s32.totalorder %s29, 0
      %p202 = por %p200, %p201
      %p203 = scmp.le.s32.totalorder 1, %s23
      %p204 = scmp.lt.s32.totalorder %s23, 5
      %p205 = pnand %p203, %p204
      %p206 = pneg %p205
      // Predicated region
      $region9: #{tpu_custom_call.1} parent=5 // pred_check
        _
      $region10: #{tpu_custom_call.1} parent=5 // pred_check_branch
        %208 = sbr.rel (%p205) target = $region12
      $region11: #{tpu_custom_call.1} parent=5 // pred_region
        %s209 = ssub.s32 %s23, 1
        // Predicated region
        $region13: #{tpu_custom_call.1} parent=11 // pred_check
          %p210 = pneg %p96
        $region14: #{tpu_custom_call.1} parent=11 // pred_check_branch
          %212 = sbr.rel (%p210) target = $region16
        $region15: #{tpu_custom_call.1} parent=11 // pred_region
          %s214 = ssub.s32 128, 128
          %215 = vsyncadd [#allocation6], %s214
          %s217 = sshll.u32 [#allocation5], 4
          %s218 = int_to_ptr.vmem [resolvable:$true] %s217
          %220 = dma.hbm_to_vmem [thread:$0]  %s2, 128, %s218, [#allocation6]
        $region16: #{tpu_custom_call.1} parent=11 // pred_fallthru
          _
        // Predicated region
        $region17: #{tpu_custom_call.1} parent=11 // pred_check
          %p221 = pneg %p117
        $region18: #{tpu_custom_call.1} parent=11 // pred_check_branch
          %223 = sbr.rel (%p221) target = $region20
        $region19: #{tpu_custom_call.1} parent=11 // pred_region
          _
        $region20: #{tpu_custom_call.1} parent=11 // pred_fallthru
          _
      $region12: #{tpu_custom_call.1} parent=5 // pred_fallthru
        _
      %p224 = scmp.lt.s32.totalorder %s23, 4
      // Predicated region
      $region21: #{tpu_custom_call.1} parent=5 // pred_check
        %p225 = pneg %p224
      $region22: #{tpu_custom_call.1} parent=5 // pred_check_branch
        %227 = sbr.rel (%p225) target = $region24
      $region23: #{tpu_custom_call.1} parent=5 // pred_region
        // Predicated region
        $region25: #{tpu_custom_call.1} parent=23 // pred_check
          %p228 = pneg %p43
        $region26: #{tpu_custom_call.1} parent=23 // pred_check_branch
          %230 = sbr.rel (%p228) target = $region28
        $region27: #{tpu_custom_call.1} parent=23 // pred_region
          %s231 = smul.u32 2, %s23
          %p232 = scmp.lt.s32.totalorder %s231, 7
          %s233 = scalar_select %p232, %s231, 7
          %s234 = scalar_lea.vmem %s0, %s233
          %s235 = smul.u32 2, %s23
        $region28: #{tpu_custom_call.1} parent=23 // pred_fallthru
          _
        // Predicated region
        $region29: #{tpu_custom_call.1} parent=23 // pred_check
          %p236 = pneg %p69
        $region30: #{tpu_custom_call.1} parent=23 // pred_check_branch
          %238 = sbr.rel (%p236) target = $region32
        $region31: #{tpu_custom_call.1} parent=23 // pred_region
          %s239 = sand.u32 %s59, 1
          %s240 = scalar_lea.sflag [#allocation3], %s239
          %s241 = sand.u32 %s59, 1
          %s242 = smul.addr %s241, 8
          %s243 = scalar_lea.vmem [#allocation2], %s242
          %s244 = smul.u32 2, %s23
          %s246 = ssub.s32 128, 128
          %247 = vsyncadd %s240, %s246
          %s248 = smul.addr %s244, 64
          %s249 = scalar_lea.hbm %s1, %s248
          %s251 = sshll.u32 %s243, 4
          %s252 = int_to_ptr.vmem [resolvable:$true] %s251
          %254 = dma.hbm_to_vmem [thread:$0]  %s249, 128, %s252, %s240
        $region32: #{tpu_custom_call.1} parent=23 // pred_fallthru
          _
      $region24: #{tpu_custom_call.1} parent=5 // pred_fallthru
        _
      %p255 = scmp.le.s32.totalorder 1, %s23
      %p256 = scmp.lt.s32.totalorder %s23, 5
      %p257 = pnand %p255, %p256
      %p258 = pneg %p257
      // Predicated region
      $region33: #{tpu_custom_call.1} parent=5 // pred_check
        _
      $region34: #{tpu_custom_call.1} parent=5 // pred_check_branch
        %260 = sbr.rel (%p257) target = $region36
      $region35: #{tpu_custom_call.1} parent=5 // pred_region
        %s261 = ssub.s32 %s23, 1
        %s262 = sand.u32 %s62, 1
        %s263 = scalar_lea.sflag [#allocation3], %s262
        %s264 = sand.u32 %s62, 1
        %s265 = smul.addr %s264, 8
        %s266 = scalar_lea.vmem [#allocation2], %s265
        // Predicated region
        $region37: #{tpu_custom_call.1} parent=35 // pred_check
          %p267 = pneg %p75
        $region38: #{tpu_custom_call.1} parent=35 // pred_check_branch
          %269 = sbr.rel (%p267) target = $region40
        $region39: #{tpu_custom_call.1} parent=35 // pred_region
          %270 = dma.done %s263, 128
        $region40: #{tpu_custom_call.1} parent=35 // pred_fallthru
          _
        // Predicated region
        $region41: #{tpu_custom_call.1} parent=35 // pred_check
          %p271 = pneg %p96
        $region42: #{tpu_custom_call.1} parent=35 // pred_check_branch
          %273 = sbr.rel (%p271) target = $region44
        $region43: #{tpu_custom_call.1} parent=35 // pred_region
          %274 = dma.done [#allocation6], 128
        $region44: #{tpu_custom_call.1} parent=35 // pred_fallthru
          _
        %s275 = smul.u32 2, %s28
        %p276 = scmp.lt.s32.totalorder %s275, 7
        %s277 = scalar_select %p276, %s275, 7
        %s278 = scalar_lea.vmem %s0, %s277
        %p279 = pneg %p49
        %p280 = pneg %p46
        %s281 = sand.u32 %s62, 1
        %s282 = scalar_lea.sflag [#allocation3], %s281
        %s283 = sand.u32 %s62, 1
        %s284 = smul.addr %s283, 8
        %s285 = scalar_lea.vmem [#allocation2], %s284
        %p286 = pneg %p75
        %p287 = pneg %p72
        %p288 = pneg %p96
        %p289 = pneg %p93
        %p290 = pneg %p117
        %p291 = pneg %p114
        %p292 = pneg %p143
        %p293 = pneg %p140
        %s294 = sand.u32 %s130, 1
        %s295 = scalar_lea.sflag [#allocation4], %s294
        %s296 = sand.u32 %s130, 1
        %s297 = smul.addr %s296, 8
        %s298 = scalar_lea.vmem [#allocation7], %s297
        %p299 = pneg %p169
        %p300 = pneg %p166
        %s301 = sand.u32 %s28, 1
        %s302 = scalar_lea.sflag [#allocation9], %s301
        %s303 = sand.u32 %s156, 1
        %s304 = smul.addr %s303, 16
        %s305 = scalar_lea.vmem [#allocation8], %s304
        %p306 = pneg %p195
        %p307 = pneg %p192
        %s308 = sand.u32 %s28, 1
        %s309 = scalar_lea.sflag [#allocation9], %s308
        %s310 = sand.u32 %s182, 1
        %s311 = smul.addr %s310, 2
        %s312 = scalar_lea.vmem [#allocation10], %s311
        %s313 = smul.u32 2, %s28
        %p314 = scmp.lt.s32.totalorder %s313, 7
        %s315 = scalar_select %p314, %s313, 7
        %s316 = scalar_lea.vmem %s0, %s315
        %s317 = smul.u32 2, %s28
        %s318 = smul.u32 2, %s28
        %s319 = smul.u32 2, %s28
        %s320 = smul.u32 2, %s28
        %s321 = smul.u32 2, %s28
        %v322 = vld [vmem:[%s316] sm:$0x3]
        %v323 = vld [vmem:[%s266] sm:$0xff]
        %v324 = vld [vmem:[#allocation5] sm:$0xff]
        %326 = vset.pattern.permute.xlu0 0
        %327 = vperm.xlu0 %326, %v324
        %v328 = vpop.permute.xlu0 %327
        %vm330 = vcmp.eq.s32.totalorder %v322, 1
        %v331 = vsel %vm330, 1, 0
        %v332 = vlaneseq
        %v333 = vshrl.u32 %v332, 7
        %v334 = vsub.s32 0, %v333
        %v335 = vrot.slane %v331, %v334
        %v336 = vlaneseq
        %v337 = vshrl.u32 %v336, 7
        %v338 = vsub.s32 1, %v337
        %v339 = vrot.slane %v331, %v338
        %vm340 = vcmp.eq.s32.totalorder %v335, 1
        %vm341 = vcmp.eq.s32.totalorder %v339, 1
        %342 = vset.pattern.permute.xlu0 1
        %343 = vperm.xlu0 %342, %v324
        %v344 = vpop.permute.xlu0 %343
        %v346 = vsel %vm340, %v344, %v328
        %v347 = vsel %vm341, %v344, %v328
        %vm348 = vcmp.eq.s32.totalorder %v322, 2
        %v349 = vsel %vm348, 1, 0
        %v350 = vlaneseq
        %v351 = vshrl.u32 %v350, 7
        %v352 = vsub.s32 0, %v351
        %v353 = vrot.slane %v349, %v352
        %v354 = vlaneseq
        %v355 = vshrl.u32 %v354, 7
        %v356 = vsub.s32 1, %v355
        %v357 = vrot.slane %v349, %v356
        %vm358 = vcmp.eq.s32.totalorder %v353, 1
        %vm359 = vcmp.eq.s32.totalorder %v357, 1
        %360 = vset.pattern.permute.xlu0 2
        %361 = vperm.xlu0 %360, %v324
        %v362 = vpop.permute.xlu0 %361
        %v364 = vsel %vm358, %v362, %v346
        %v365 = vsel %vm359, %v362, %v347
        %vm366 = vcmp.eq.s32.totalorder %v322, 3
        %v367 = vsel %vm366, 1, 0
        %v368 = vlaneseq
        %v369 = vshrl.u32 %v368, 7
        %v370 = vsub.s32 0, %v369
        %v371 = vrot.slane %v367, %v370
        %v372 = vlaneseq
        %v373 = vshrl.u32 %v372, 7
        %v374 = vsub.s32 1, %v373
        %v375 = vrot.slane %v367, %v374
        %vm376 = vcmp.eq.s32.totalorder %v371, 1
        %vm377 = vcmp.eq.s32.totalorder %v375, 1
        %378 = vset.pattern.permute.xlu0 3
        %379 = vperm.xlu0 %378, %v324
        %v380 = vpop.permute.xlu0 %379
        %v382 = vsel %vm376, %v380, %v364
        %v383 = vsel %vm377, %v380, %v365
        %vm384 = vcmp.eq.s32.totalorder %v322, 4
        %v385 = vsel %vm384, 1, 0
        %v386 = vlaneseq
        %v387 = vshrl.u32 %v386, 7
        %v388 = vsub.s32 0, %v387
        %v389 = vrot.slane %v385, %v388
        %v390 = vlaneseq
        %v391 = vshrl.u32 %v390, 7
        %v392 = vsub.s32 1, %v391
        %v393 = vrot.slane %v385, %v392
        %vm394 = vcmp.eq.s32.totalorder %v389, 1
        %vm395 = vcmp.eq.s32.totalorder %v393, 1
        %396 = vset.pattern.permute.xlu0 4
        %397 = vperm.xlu0 %396, %v324
        %v398 = vpop.permute.xlu0 %397
        %v400 = vsel %vm394, %v398, %v382
        %v401 = vsel %vm395, %v398, %v383
        %vm402 = vcmp.eq.s32.totalorder %v322, 5
        %v403 = vsel %vm402, 1, 0
        %v404 = vlaneseq
        %v405 = vshrl.u32 %v404, 7
        %v406 = vsub.s32 0, %v405
        %v407 = vrot.slane %v403, %v406
        %v408 = vlaneseq
        %v409 = vshrl.u32 %v408, 7
        %v410 = vsub.s32 1, %v409
        %v411 = vrot.slane %v403, %v410
        %vm412 = vcmp.eq.s32.totalorder %v407, 1
        %vm413 = vcmp.eq.s32.totalorder %v411, 1
        %414 = vset.pattern.permute.xlu0 5
        %415 = vperm.xlu0 %414, %v324
        %v416 = vpop.permute.xlu0 %415
        %v418 = vsel %vm412, %v416, %v400
        %v419 = vsel %vm413, %v416, %v401
        %vm420 = vcmp.eq.s32.totalorder %v322, 6
        %v421 = vsel %vm420, 1, 0
        %v422 = vlaneseq
        %v423 = vshrl.u32 %v422, 7
        %v424 = vsub.s32 0, %v423
        %v425 = vrot.slane %v421, %v424
        %v426 = vlaneseq
        %v427 = vshrl.u32 %v426, 7
        %v428 = vsub.s32 1, %v427
        %v429 = vrot.slane %v421, %v428
        %vm430 = vcmp.eq.s32.totalorder %v425, 1
        %vm431 = vcmp.eq.s32.totalorder %v429, 1
        %432 = vset.pattern.permute.xlu0 6
        %433 = vperm.xlu0 %432, %v324
        %v434 = vpop.permute.xlu0 %433
        %v436 = vsel %vm430, %v434, %v418
        %v437 = vsel %vm431, %v434, %v419
        %vm438 = vcmp.eq.s32.totalorder %v322, 7
        %v439 = vsel %vm438, 1, 0
        %v440 = vlaneseq
        %v441 = vshrl.u32 %v440, 7
        %v442 = vsub.s32 0, %v441
        %v443 = vrot.slane %v439, %v442
        %v444 = vlaneseq
        %v445 = vshrl.u32 %v444, 7
        %v446 = vsub.s32 1, %v445
        %v447 = vrot.slane %v439, %v446
        %vm448 = vcmp.eq.s32.totalorder %v443, 1
        %vm449 = vcmp.eq.s32.totalorder %v447, 1
        %450 = vset.pattern.permute.xlu0 7
        %451 = vperm.xlu0 %450, %v324
        %v452 = vpop.permute.xlu0 %451
        %v454 = vsel %vm448, %v452, %v436
        %v455 = vsel %vm449, %v452, %v437
        %v458 = vcombine.high %v454, %v455
        %v460 = vmul.f32 %v323, %v458
        %v462 = vrot.slane %v460, 5
        %v463 = vrot.slane %v462, 4
        %v465 = vadd.f32 %v460, %v463
        %v467 = vrot.slane %v323, 5
        %v468 = vrot.slane %v467, 4
        %v470 = vadd.f32 %v323, %v468
        %v471 = vrot.slane %v460, 6
        %v472 = vrot.slane %v471, 4
        %v474 = vadd.f32 %v465, %v472
        %v475 = vrot.slane %v323, 6
        %v476 = vrot.slane %v475, 4
        %v478 = vadd.f32 %v470, %v476
        %v479 = vrot.slane %v460, 7
        %v480 = vrot.slane %v479, 4
        %v482 = vadd.f32 %v474, %v480
        %v483 = vrot.slane %v323, 7
        %v484 = vrot.slane %v483, 4
        %v486 = vadd.f32 %v478, %v484
        %v487 = vlog2.pop %v482
        %v488 = vmul.f32 %v487, 0.6931472
        %v489 = vlog2.pop %v486
        %v490 = vmul.f32 %v489, 0.6931472
        %v491 = vsub.f32 %v488, %v490
        %v494 = vunpack.c.l.s4 1966171168
        %v495 = vunpack.c.0.s8 %v494
        %v496 = vlaneseq
        %v497 = vshrl.u32 %v496, 7
        %v498 = vsub.s32 %v495, %v497
        %v499 = vrot.slane %v491, %v498
        %v501 = vunpack.c.l.s4 1966171168
        %v502 = vunpack.c.0.s8 %v501
        %v503 = vlaneseq
        %v504 = vshrl.u32 %v503, 7
        %v505 = vsub.s32 %v502, %v504
        %v506 = vrot.slane %v499, %v505
        %v508 = vlaneseq
        %vm509 = vcmp.ge.s32.totalorder %v508, 0
        %vm510 = vcmp.lt.s32.totalorder %v508, 256
        %vm511 = vmand %vm509, %vm510
        %512 = vst.msk [vmem:[%s312] sm:$0x3] %vm511, %v506
        %v513 = vld [vmem:[%s3] sm:$0xff]
        %515 = vset.pattern.permute.xlu0 0
        %516 = vperm.xlu0 %515, %v513
        %v517 = vpop.permute.xlu0 %516
        %v519 = vlaneseq
        %v520 = vshrl.u32 %v519, 7
        %v521 = vsub.s32 0, %v520
        %v522 = vrot.slane %v323, %v521
        %v523 = vlaneseq
        %v524 = vshrl.u32 %v523, 7
        %v525 = vsub.s32 4, %v524
        %v526 = vrot.slane %v323, %v525
        %v529 = vlaneseq
        %v530 = vshrl.u32 %v529, 7
        %v531 = vsub.s32 0, %v530
        %v532 = vrot.slane %v522, %v531
        %v533 = vlaneseq
        %v534 = vshrl.u32 %v533, 7
        %v535 = vsub.s32 0, %v534
        %v536 = vrot.slane %v526, %v535
        %v537 = vmul.f32 %v517, %v532
        %v538 = vmul.f32 %v517, %v536
        %539 = vset.pattern.permute.xlu0 1
        %540 = vperm.xlu0 %539, %v513
        %v541 = vpop.permute.xlu0 %540
        %v543 = vlaneseq
        %v544 = vshrl.u32 %v543, 7
        %v545 = vsub.s32 1, %v544
        %v546 = vrot.slane %v323, %v545
        %v547 = vlaneseq
        %v548 = vshrl.u32 %v547, 7
        %v549 = vsub.s32 5, %v548
        %v550 = vrot.slane %v323, %v549
        %v553 = vlaneseq
        %v554 = vshrl.u32 %v553, 7
        %v555 = vsub.s32 1, %v554
        %v556 = vrot.slane %v546, %v555
        %v557 = vlaneseq
        %v558 = vshrl.u32 %v557, 7
        %v559 = vsub.s32 1, %v558
        %v560 = vrot.slane %v550, %v559
        %v561 = vmul.f32 %v541, %v556
        %v562 = vmul.f32 %v541, %v560
        %v563 = vadd.f32 %v537, %v561
        %v564 = vadd.f32 %v538, %v562
        %565 = vset.pattern.permute.xlu0 2
        %566 = vperm.xlu0 %565, %v513
        %v567 = vpop.permute.xlu0 %566
        %v569 = vlaneseq
        %v570 = vshrl.u32 %v569, 7
        %v571 = vsub.s32 2, %v570
        %v572 = vrot.slane %v323, %v571
        %v573 = vlaneseq
        %v574 = vshrl.u32 %v573, 7
        %v575 = vsub.s32 6, %v574
        %v576 = vrot.slane %v323, %v575
        %v579 = vlaneseq
        %v580 = vshrl.u32 %v579, 7
        %v581 = vsub.s32 2, %v580
        %v582 = vrot.slane %v572, %v581
        %v583 = vlaneseq
        %v584 = vshrl.u32 %v583, 7
        %v585 = vsub.s32 2, %v584
        %v586 = vrot.slane %v576, %v585
        %v587 = vmul.f32 %v567, %v582
        %v588 = vmul.f32 %v567, %v586
        %v589 = vadd.f32 %v563, %v587
        %v590 = vadd.f32 %v564, %v588
        %591 = vset.pattern.permute.xlu0 3
        %592 = vperm.xlu0 %591, %v513
        %v593 = vpop.permute.xlu0 %592
        %v595 = vlaneseq
        %v596 = vshrl.u32 %v595, 7
        %v597 = vsub.s32 3, %v596
        %v598 = vrot.slane %v323, %v597
        %v599 = vlaneseq
        %v600 = vshrl.u32 %v599, 7
        %v601 = vsub.s32 7, %v600
        %v602 = vrot.slane %v323, %v601
        %v605 = vlaneseq
        %v606 = vshrl.u32 %v605, 7
        %v607 = vsub.s32 3, %v606
        %v608 = vrot.slane %v598, %v607
        %v609 = vlaneseq
        %v610 = vshrl.u32 %v609, 7
        %v611 = vsub.s32 3, %v610
        %v612 = vrot.slane %v602, %v611
        %v613 = vmul.f32 %v593, %v608
        %v614 = vmul.f32 %v593, %v612
        %v615 = vadd.f32 %v589, %v613
        %v616 = vadd.f32 %v590, %v614
        %v617 = vcombine.low %v454, %v455
        %619 = vst [vmem:[%s298] sm:$0xff] %v617
        %620 = vst [vmem:[%s305] sm:$0xff] %v615
        %621 = vst [vmem:[%s305 + $0x8] sm:$0xff] %v616
        %s622 = sand.u32 %s130, 1
        %s623 = scalar_lea.sflag [#allocation4], %s622
        %s624 = sand.u32 %s130, 1
        %s625 = smul.addr %s624, 8
        %s626 = scalar_lea.vmem [#allocation7], %s625
        %s627 = sand.u32 %s28, 1
        %s628 = scalar_lea.sflag [#allocation9], %s627
        %s629 = sand.u32 %s156, 1
        %s630 = smul.addr %s629, 16
        %s631 = scalar_lea.vmem [#allocation8], %s630
        %s632 = sand.u32 %s28, 1
        %s633 = scalar_lea.sflag [#allocation9], %s632
        %s634 = sand.u32 %s182, 1
        %s635 = smul.addr %s634, 2
        %s636 = scalar_lea.vmem [#allocation10], %s635
        // Predicated region
        $region45: #{tpu_custom_call.1} parent=35 // pred_check
          %p637 = pneg %p140
        $region46: #{tpu_custom_call.1} parent=35 // pred_check_branch
          %639 = sbr.rel (%p637) target = $region48
        $region47: #{tpu_custom_call.1} parent=35 // pred_region
          %s640 = smul.u32 2, %s28
          %s642 = ssub.s32 128, 128
          %643 = vsyncadd %s623, %s642
          %s644 = smul.addr %s640, 64
          %s645 = scalar_lea.hbm %s4, %s644
          %s647 = sshll.u32 %s626, 4
          %s648 = int_to_ptr.vmem [resolvable:$true] %s647
          %650 = dma.vmem_to_hbm [thread:$0]  %s648, 128, %s645, %s623
        $region48: #{tpu_custom_call.1} parent=35 // pred_fallthru
          _
        // Predicated region
        $region49: #{tpu_custom_call.1} parent=35 // pred_check
          %p651 = pneg %p166
        $region50: #{tpu_custom_call.1} parent=35 // pred_check_branch
          %653 = sbr.rel (%p651) target = $region52
        $region51: #{tpu_custom_call.1} parent=35 // pred_region
          %s654 = smul.u32 2, %s28
          %s656 = ssub.s32 256, 256
          %657 = vsyncadd %s628, %s656
          %s658 = smul.addr %s654, 128
          %s659 = scalar_lea.hbm %s5, %s658
          %s661 = sshll.u32 %s631, 4
          %s662 = int_to_ptr.vmem [resolvable:$true] %s661
          %664 = dma.vmem_to_hbm [thread:$0]  %s662, 256, %s659, %s628
        $region52: #{tpu_custom_call.1} parent=35 // pred_fallthru
          _
        // Predicated region
        $region53: #{tpu_custom_call.1} parent=35 // pred_check
          %p665 = pneg %p192
        $region54: #{tpu_custom_call.1} parent=35 // pred_check_branch
          %667 = sbr.rel (%p665) target = $region56
        $region55: #{tpu_custom_call.1} parent=35 // pred_region
          %s668 = smul.u32 2, %s28
          %s670 = ssub.s32 32, 32
          %671 = vsyncadd %s633, %s670
          %s672 = smul.addr %s668, 16
          %s673 = scalar_lea.hbm %s6, %s672
          %s675 = sshll.u32 %s636, 4
          %s676 = int_to_ptr.vmem [resolvable:$true] %s675
          %678 = dma.vmem_to_hbm [thread:$0]  %s676, 32, %s673, %s633
        $region56: #{tpu_custom_call.1} parent=35 // pred_fallthru
          _
      $region36: #{tpu_custom_call.1} parent=5 // pred_fallthru
        _
      %p679 = scmp.le.s32.totalorder 2, %s23
      // Predicated region
      $region57: #{tpu_custom_call.1} parent=5 // pred_check
        %p680 = pneg %p679
      $region58: #{tpu_custom_call.1} parent=5 // pred_check_branch
        %682 = sbr.rel (%p680) target = $region60
      $region59: #{tpu_custom_call.1} parent=5 // pred_region
        %s683 = ssub.s32 %s23, 2
        // Predicated region
        $region61: #{tpu_custom_call.1} parent=59 // pred_check
          %p684 = pneg %p146
        $region62: #{tpu_custom_call.1} parent=59 // pred_check_branch
          %686 = sbr.rel (%p684) target = $region64
        $region63: #{tpu_custom_call.1} parent=59 // pred_region
          %s687 = sand.u32 %s131, 1
          %s688 = scalar_lea.sflag [#allocation4], %s687
          %s689 = sand.u32 %s131, 1
          %s690 = smul.addr %s689, 8
          %s691 = scalar_lea.vmem [#allocation7], %s690
          %692 = dma.done %s688, 128
        $region64: #{tpu_custom_call.1} parent=59 // pred_fallthru
          _
        // Predicated region
        $region65: #{tpu_custom_call.1} parent=59 // pred_check
          %p693 = pneg %p172
        $region66: #{tpu_custom_call.1} parent=59 // pred_check_branch
          %695 = sbr.rel (%p693) target = $region68
        $region67: #{tpu_custom_call.1} parent=59 // pred_region
          %s696 = sand.u32 %s29, 1
          %s697 = scalar_lea.sflag [#allocation9], %s696
          %s698 = sand.u32 %s157, 1
          %s699 = smul.addr %s698, 16
          %s700 = scalar_lea.vmem [#allocation8], %s699
          %701 = dma.done %s697, 256
        $region68: #{tpu_custom_call.1} parent=59 // pred_fallthru
          _
        // Predicated region
        $region69: #{tpu_custom_call.1} parent=59 // pred_check
          %p702 = pneg %p198
        $region70: #{tpu_custom_call.1} parent=59 // pred_check_branch
          %704 = sbr.rel (%p702) target = $region72
        $region71: #{tpu_custom_call.1} parent=59 // pred_region
          %s705 = sand.u32 %s29, 1
          %s706 = scalar_lea.sflag [#allocation9], %s705
          %s707 = sand.u32 %s183, 1
          %s708 = smul.addr %s707, 2
          %s709 = scalar_lea.vmem [#allocation10], %s708
          %710 = dma.done %s706, 32
        $region72: #{tpu_custom_call.1} parent=59 // pred_fallthru
          _
      $region60: #{tpu_custom_call.1} parent=5 // pred_fallthru
        _
    $region6: #{tpu_custom_call.1} parent=1 // loop_footer
      %s27 = sadd.s32 1, %s23
    $region7: #{tpu_custom_call.1} parent=1 // loop_footer_branch
      %22 = sbr.rel target = $region3
    $region8: #{tpu_custom_call.1} parent=1 // loop_exit
      _
    %711 = vsyncpa [#allocation3], 1
    %s712 = scalar_lea.sflag [#allocation3], 1
    %713 = vsyncpa %s712, 1
    %714 = vsyncpa [#allocation6], 1
    %715 = vsyncpa [#allocation4], 1
    %s716 = scalar_lea.sflag [#allocation4], 1
    %717 = vsyncpa %s716, 1
    %718 = vsyncpa [#allocation9], 1
    %s719 = scalar_lea.sflag [#allocation9], 1
    %720 = vsyncpa %s719, 1

</llo_original>
